<compile_context>
chip_gen: v5e
topology: v5e:2x2
jax: 0.10.0
libtpu: 0.0.40
codegen_flags: <defaults>
</compile_context>

<pallas_src>
import jax
import jax.numpy as jnp
from jax.experimental import pallas as pl
from jax.experimental.pallas import tpu as pltpu


def fold_linear_chain(weights, biases):
    """Fold a chain of affine layers (no nonlinearity) into one affine map.

    weights: list of (out_f, in_f) arrays (PyTorch layout), biases: (out_f,).
    Returns W_eff (out_last, in_first) and b_eff (out_last,), all in f32.
    """
    w_eff = jnp.asarray(weights[0], jnp.float32)
    b_eff = jnp.asarray(biases[0], jnp.float32)
    for w, b in zip(weights[1:], biases[1:]):
        w = jnp.asarray(w, jnp.float32)
        b = jnp.asarray(b, jnp.float32)
        w_eff = w @ w_eff
        b_eff = w @ b_eff + b
    return w_eff, b_eff


def _make_affine_kernel(in_f):
    """Streaming affine kernel: out = W @ x + b with x laid out (in_f, tile_n).

    in_f is tiny (coordinate dimension), so the matmul is done as unrolled
    broadcast FMAs on the VPU; the accumulator is seeded with the bias.
    """
    # TODO(synk): if the folded in_features ever grows large, switch this body
    # to a bf16 MXU jnp.dot with f32 accumulation instead of unrolled FMAs.
    def kernel(x_ref, w_ref, b_ref, out_ref):
        h = x_ref[...]                                     # (in_f, tile_n) f32
        acc = b_ref[...] + w_ref[:, 0:1] * h[0:1, :]       # bias-seeded FMA
        for k in range(1, in_f):
            acc = acc + w_ref[:, k:k + 1] * h[k:k + 1, :]
        out_ref[...] = acc.astype(out_ref.dtype)           # lane-dense store

    return kernel


def relu_mlp_forward(coords, weights, biases, *, tile_n=1024, min_grid_steps=2):
    """Forward pass of the (mis-named) `ReLU` module: a chain of Linear layers.

    coords : (N, in_features) float32
    weights: list of (out_f, in_f) float32 arrays (PyTorch layout)
    biases : list of (out_f,) float32 arrays
    Returns (output, coords) like the PyTorch module.
    """
    n, in_f = coords.shape

    # Fold the whole (purely linear) network into one affine map, in f32.
    w_eff, b_eff = fold_linear_chain(weights, biases)      # (out_f, in_f), (out_f,)
    out_f = w_eff.shape[0]

    # Points on the lane axis: lane-dense activations and unmasked stores.
    # TODO(synk): for very large N this host-side transpose is an extra HBM
    # pass; fuse it into the coords producer if it shows up in the trace.
    x = jnp.asarray(coords, jnp.float32).T                 # (in_f, N)

    n_aligned = ((n + 127) // 128) * 128
    # Cap the tile so the 'parallel' grid axis has >= min_grid_steps steps
    # whenever the point count allows it (keeps both v7x TensorCores busy).
    cap = n_aligned
    if n_aligned >= min_grid_steps * 128:
        cap = (n_aligned // min_grid_steps) // 128 * 128
    tile_n = max(128, min(((tile_n + 127) // 128) * 128, cap))
    n_total = ((n + tile_n - 1) // tile_n) * tile_n
    if n_total != n:
        x = jnp.pad(x, ((0, 0), (0, n_total - n)))

    kernel = _make_affine_kernel(in_f)

    out_t = pl.pallas_call(
        kernel,
        out_shape=jax.ShapeDtypeStruct((out_f, n_total), jnp.float32),
        grid_spec=pltpu.PrefetchScalarGridSpec(
            num_scalar_prefetch=0,
            grid=(n_total // tile_n,),
            in_specs=[
                # Streaming input tile: (in_f, tile_n); in_f equals the full
                # array dim so the (8,128) rule is satisfied.
                pl.BlockSpec((in_f, tile_n), lambda i: (0, i)),
                # Grid-invariant folded weight / bias (fetched once; tiny).
                pl.BlockSpec(w_eff.shape, lambda i: (0, 0)),
                pl.BlockSpec((out_f, 1), lambda i: (0, 0)),
            ],
            out_specs=pl.BlockSpec((out_f, tile_n), lambda i: (0, i)),
        ),
        compiler_params=pltpu.CompilerParams(
            dimension_semantics=("parallel",),
            vmem_limit_bytes=32 * 1024 * 1024,
        ),
    )(x, w_eff, b_eff.reshape(out_f, 1))

    output = out_t[:, :n].T                                 # (N, out_features)
    return output, coords


def mlp_reference(coords, weights, biases):
    """Pure-JAX f32 reference: the un-folded chain of Linear layers."""
    h = jnp.asarray(coords, jnp.float32)
    for w, b in zip(weights, biases):
        h = jnp.dot(h, jnp.asarray(w, jnp.float32).T,
                    preferred_element_type=jnp.float32) + jnp.asarray(b, jnp.float32)
    return h


def init_params(key, in_features, hidden_features, hidden_layers, out_features):
    """Deterministic PyTorch-style (uniform +-1/sqrt(fan_in)) initialization."""
    dims = (
        [(in_features, hidden_features)]
        + [(hidden_features, hidden_features)] * hidden_layers
        + [(hidden_features, out_features)]
    )
    weights, biases = [], []
    for fan_in, fan_out in dims:
        key, kw, kb = jax.random.split(key, 3)
        bound = 1.0 / jnp.sqrt(jnp.float32(fan_in))
        w = jax.random.uniform(
            kw, (fan_out, fan_in), jnp.float32, minval=-bound, maxval=bound
        )
        b = jax.random.uniform(
            kb, (fan_out,), jnp.float32, minval=-bound, maxval=bound
        )
        weights.append(w)
        biases.append(b)
    return weights, biases


if __name__ == "__main__":
    in_features = 2
    hidden_features = 32
    hidden_layers = 2
    out_features = 1
    n_points = 256

    key = jax.random.PRNGKey(0)
    key, kc = jax.random.split(key)
    coords = jax.random.uniform(
        kc, (n_points, in_features), jnp.float32, minval=-1.0, maxval=1.0
    )
    weights, biases = init_params(
        key, in_features, hidden_features, hidden_layers, out_features
    )

    output, coords_out = relu_mlp_forward(coords, weights, biases)
    jax.block_until_ready(output)
    jax.block_until_ready(coords_out)

    assert output.shape == (n_points, out_features)
    assert coords_out.shape == coords.shape

    # Folding is exact up to f32 associativity: compare against the full-f32
    # un-folded linear chain.
    ref_f32 = mlp_reference(coords, weights, biases)
    assert jnp.allclose(output, ref_f32, atol=1e-4, rtol=1e-4), float(
        jnp.max(jnp.abs(output - ref_f32))
    )

    print("KERNEL_OK")
</pallas_src>

<mosaic_0001>
module attributes {stable_mosaic.version = 11 : i64} {
  func.func @kernel(%arg0: i32, %arg1: memref<2x128xf32, #tpu.memory_space<vmem>>, %arg2: memref<1x2xf32, #tpu.memory_space<vmem>>, %arg3: memref<1x1xf32, #tpu.memory_space<vmem>>, %arg4: memref<1x128xf32, #tpu.memory_space<vmem>>) attributes {dimension_semantics = [#tpu.dimension_semantics<parallel>], iteration_bounds = array<i64: 2>, scalar_prefetch = 0 : i64, scratch_operands = 0 : i64, tpu.core_type = #tpu.core_type<tc>, window_params = [{transform_indices = @transform_0, window_bounds = array<i64: 2, 128>}, {pipeline_mode = #tpu.pipeline_mode<synchronous>, transform_indices = @transform_1, window_bounds = array<i64: 1, 2>}, {pipeline_mode = #tpu.pipeline_mode<synchronous>, transform_indices = @transform_2, window_bounds = array<i64: 1, 1>}, {transform_indices = @transform_3, window_bounds = array<i64: 1, 128>}]} {
    %c0 = arith.constant 0 : index
    %c0_0 = arith.constant 0 : index
    %0 = vector.load %arg1[%c0, %c0_0] : memref<2x128xf32, #tpu.memory_space<vmem>>, vector<2x128xf32>
    %c0_1 = arith.constant 0 : index
    %c0_2 = arith.constant 0 : index
    %1 = vector.load %arg3[%c0_1, %c0_2] : memref<1x1xf32, #tpu.memory_space<vmem>>, vector<1x1xf32>
    %c0_3 = arith.constant 0 : index
    %c0_4 = arith.constant 0 : index
    %2 = vector.load %arg2[%c0_3, %c0_4] : memref<1x2xf32, #tpu.memory_space<vmem>>, vector<1x1xf32>
    %3 = vector.extract_strided_slice %0 {offsets = [0, 0], sizes = [1, 128], strides = [1, 1]} : vector<2x128xf32> to vector<1x128xf32>
    %4 = vector.broadcast %2 : vector<1x1xf32> to vector<1x128xf32>
    %5 = arith.mulf %4, %3 : vector<1x128xf32>
    %6 = vector.broadcast %1 : vector<1x1xf32> to vector<1x128xf32>
    %7 = arith.addf %6, %5 : vector<1x128xf32>
    %c0_5 = arith.constant 0 : index
    %c1 = arith.constant 1 : index
    %8 = vector.load %arg2[%c0_5, %c1] : memref<1x2xf32, #tpu.memory_space<vmem>>, vector<1x1xf32>
    %9 = vector.extract_strided_slice %0 {offsets = [1, 0], sizes = [1, 128], strides = [1, 1]} : vector<2x128xf32> to vector<1x128xf32>
    %10 = vector.broadcast %8 : vector<1x1xf32> to vector<1x128xf32>
    %11 = arith.mulf %10, %9 : vector<1x128xf32>
    %12 = arith.addf %7, %11 : vector<1x128xf32>
    %c0_6 = arith.constant 0 : index
    %c0_7 = arith.constant 0 : index
    %13 = vector.load %arg4[%c0_6, %c0_7] : memref<1x128xf32, #tpu.memory_space<vmem>>, vector<1x128xf32>
    tpu.vector_store %arg4[%c0_6, %c0_7], %12 {strides = array<i32>} : memref<1x128xf32, #tpu.memory_space<vmem>>, vector<1x128xf32>,
    return
  }
  func.func @transform_0(%arg0: i32) -> (i32, i32) {
    %c0_i32 = arith.constant 0 : i32
    %c0_i32_0 = arith.constant 0 : i32
    return %c0_i32, %arg0 : i32, i32
  }
  func.func @transform_1(%arg0: i32) -> (i32, i32) {
    %c0_i32 = arith.constant 0 : i32
    %c0_i32_0 = arith.constant 0 : i32
    %c0_i32_1 = arith.constant 0 : i32
    return %c0_i32, %c0_i32_0 : i32, i32
  }
  func.func @transform_2(%arg0: i32) -> (i32, i32) {
    %c0_i32 = arith.constant 0 : i32
    %c0_i32_0 = arith.constant 0 : i32
    %c0_i32_1 = arith.constant 0 : i32
    return %c0_i32, %c0_i32_0 : i32, i32
  }
  func.func @transform_3(%arg0: i32) -> (i32, i32) {
    %c0_i32 = arith.constant 0 : i32
    %c0_i32_0 = arith.constant 0 : i32
    return %c0_i32, %arg0 : i32, i32
  }
}

</mosaic_0001>

<llo_original>
// kernel: tpu_custom_call.1
$region0: #{tpu_custom_call.1}
  #allocation0 [shape = 'u32[]', space=smem, size = 0x4, offset = 0x4, fixed_abs, tag = 'smem constant byte address 0x4 - core index']
  #allocation1 [shape = 'u32[72,128]{1,0:T(1,128)}', space=vmem, size = 0x9000, scoped, tag = 'internal scratch']
  #allocation2 [shape = 'f32[1,1]{1,0:T(1,128)S(1)}', space=vmem, size = 0x200, scoped, tag = 'scoped memory for tpu_custom_call.1']
  %s0 = inlined_call_operand.hbm [shape: f32[2,256], index: 0, kind: input, shape index: {}]
  %s1 = inlined_call_operand.vmem [shape: f32[1,2], index: 1, kind: input, shape index: {}]
  %s2 = inlined_call_operand.<no memory space> [shape: f32[1,1], index: 2, kind: input, shape index: {}]
  %s3 = inlined_call_operand.hbm [shape: f32[1,256], index: 3, kind: output, shape index: {}]
  %s4 = sld [smem:[#allocation0]]
  $region49: #{tpu_custom_call.1} parent=0
    _
  %s6 = ssub.s32 1, %s4
  %s7 = scalar_select 0, %s6, %s4
  %v8 = vstv %s2
  %9 = vst [vmem:[#allocation2] sm:$0x1] %v8
  $region1: #{tpu_custom_call.1} parent=0
    #allocation3 [shape = 'u8[2048]{0}', space=vmem, size = 0x800, scoped, tag = 'input window, operand 0']
    #allocation4 [shape = 's32[2]{0}', space=sflag, size = 0x8, scoped, tag = 'scoped memory for tpu_custom_call.1']
    #allocation5 [shape = 's32[2]{0}', space=sflag, size = 0x8, scoped, tag = 'scoped memory for tpu_custom_call.1']
    #allocation6 [shape = 'u8[1024]{0}', space=vmem, size = 0x400, scoped, tag = 'output window, operand 0']
    %10 = vsyncpa [#allocation4], 0
    %s11 = scalar_lea.sflag [#allocation4], 1
    %12 = vsyncpa %s11, 0
    %13 = vsyncpa [#allocation5], 0
    %s14 = scalar_lea.sflag [#allocation5], 1
    %15 = vsyncpa %s14, 0
    loop: start=0, step=1, limit=4
    $region2: #{tpu_custom_call.1} parent=1 // loop_pre_header
      _
    $region3: #{tpu_custom_call.1} parent=1 // loop_header
      %s17 = sphi 0, %s21
      %p18 = scmp.ge.s32.totalorder %s17, 4
      %s27 = sphi 0, %s29
      %s30 = sphi 0, %s27
      %s31 = sphi 0, %s30
      %s47 = sphi 0, %s31
      %s51 = sphi 0, %s51
      %s53 = sphi 0, %s51
      %s54 = sphi 0, %s53
      %s68 = sphi 0, %s54
      %s72 = sphi 0, %s72
      %s74 = sphi 0, %s72
      %s75 = sphi 0, %s74
      %s89 = sphi 0, %s75
      %s95 = sphi 0, %s97
      %s98 = sphi 0, %s95
      %s99 = sphi 0, %s98
      %s115 = sphi 0, %s99
    $region4: #{tpu_custom_call.1} parent=1 // loop_header_branch
      %20 = sbr.rel (%p18) target = $region8
    $region5: #{tpu_custom_call.1} parent=1 // loop_body
      %s22 = ssub.s32 %s17, 1
      %s23 = ssub.s32 %s17, 2
      %s24 = sadd.s32 %s17, 1
      %s25 = ssub.s32 %s17, %s24
      %p26 = scmp.eq.s32.totalorder %s25, 0
      %s28 = sadd.s32 %s27, 1
      %s29 = scalar_select %p26, %s27, %s28
      %p32 = pneg %p26
      %p33 = scmp.eq.s32.totalorder %s17, 1
      %p34 = por %p32, %p33
      %p35 = scmp.ne.s32.totalorder %s27, %s30
      %p36 = scmp.eq.s32.totalorder %s17, 0
      %p37 = por %p35, %p36
      %p38 = scmp.ne.s32.totalorder %s27, %s30
      %p39 = scmp.eq.s32.totalorder %s22, 1
      %p40 = por %p38, %p39
      %p41 = scmp.ne.s32.totalorder %s30, %s31
      %p42 = scmp.eq.s32.totalorder %s22, 0
      %p43 = por %p41, %p42
      %p44 = scmp.ne.s32.totalorder %s30, %s31
      %p45 = scmp.eq.s32.totalorder %s23, 1
      %p46 = por %p44, %p45
      %p48 = scmp.ne.s32.totalorder %s31, %s47
      %p49 = scmp.eq.s32.totalorder %s23, 0
      %p50 = por %p48, %p49
      %s52 = sadd.s32 %s51, 1
      %p55 = scmp.eq.s32.totalorder %s17, 1
      %p56 = scmp.ne.s32.totalorder %s51, %s53
      %p57 = scmp.eq.s32.totalorder %s17, 0
      %p58 = por %p56, %p57
      %p59 = scmp.ne.s32.totalorder %s51, %s53
      %p60 = scmp.eq.s32.totalorder %s22, 1
      %p61 = por %p59, %p60
      %p62 = scmp.ne.s32.totalorder %s53, %s54
      %p63 = scmp.eq.s32.totalorder %s22, 0
      %p64 = por %p62, %p63
      %p65 = scmp.ne.s32.totalorder %s53, %s54
      %p66 = scmp.eq.s32.totalorder %s23, 1
      %p67 = por %p65, %p66
      %p69 = scmp.ne.s32.totalorder %s54, %s68
      %p70 = scmp.eq.s32.totalorder %s23, 0
      %p71 = por %p69, %p70
      %s73 = sadd.s32 %s72, 1
      %p76 = scmp.eq.s32.totalorder %s17, 1
      %p77 = scmp.ne.s32.totalorder %s72, %s74
      %p78 = scmp.eq.s32.totalorder %s17, 0
      %p79 = por %p77, %p78
      %p80 = scmp.ne.s32.totalorder %s72, %s74
      %p81 = scmp.eq.s32.totalorder %s22, 1
      %p82 = por %p80, %p81
      %p83 = scmp.ne.s32.totalorder %s74, %s75
      %p84 = scmp.eq.s32.totalorder %s22, 0
      %p85 = por %p83, %p84
      %p86 = scmp.ne.s32.totalorder %s74, %s75
      %p87 = scmp.eq.s32.totalorder %s23, 1
      %p88 = por %p86, %p87
      %p90 = scmp.ne.s32.totalorder %s75, %s89
      %p91 = scmp.eq.s32.totalorder %s23, 0
      %p92 = por %p90, %p91
      %s93 = ssub.s32 %s17, %s24
      %p94 = scmp.eq.s32.totalorder %s93, 0
      %s96 = sadd.s32 %s95, 1
      %s97 = scalar_select %p94, %s95, %s96
      %p100 = pneg %p94
      %p101 = scmp.eq.s32.totalorder %s17, 1
      %p102 = por %p100, %p101
      %p103 = scmp.ne.s32.totalorder %s95, %s98
      %p104 = scmp.eq.s32.totalorder %s17, 0
      %p105 = por %p103, %p104
      %p106 = scmp.ne.s32.totalorder %s95, %s98
      %p107 = scmp.eq.s32.totalorder %s22, 1
      %p108 = por %p106, %p107
      %p109 = scmp.ne.s32.totalorder %s98, %s99
      %p110 = scmp.eq.s32.totalorder %s22, 0
      %p111 = por %p109, %p110
      %p112 = scmp.ne.s32.totalorder %s98, %s99
      %p113 = scmp.eq.s32.totalorder %s23, 1
      %p114 = por %p112, %p113
      %p116 = scmp.ne.s32.totalorder %s99, %s115
      %p117 = scmp.eq.s32.totalorder %s23, 0
      %p118 = por %p116, %p117
      %p119 = scmp.le.s32.totalorder 1, %s17
      %p120 = scmp.lt.s32.totalorder %s17, 3
      %p121 = pnand %p119, %p120
      %p122 = pneg %p121
      // Predicated region
      $region9: #{tpu_custom_call.1} parent=5 // pred_check
        _
      $region10: #{tpu_custom_call.1} parent=5 // pred_check_branch
        %124 = sbr.rel (%p121) target = $region12
      $region11: #{tpu_custom_call.1} parent=5 // pred_region
        %s125 = ssub.s32 %s17, 1
        // Predicated region
        $region13: #{tpu_custom_call.1} parent=11 // pred_check
          %p126 = pneg %p64
        $region14: #{tpu_custom_call.1} parent=11 // pred_check_branch
          %128 = sbr.rel (%p126) target = $region16
        $region15: #{tpu_custom_call.1} parent=11 // pred_region
          _
        $region16: #{tpu_custom_call.1} parent=11 // pred_fallthru
          _
        // Predicated region
        $region17: #{tpu_custom_call.1} parent=11 // pred_check
          %p129 = pneg %p85
        $region18: #{tpu_custom_call.1} parent=11 // pred_check_branch
          %131 = sbr.rel (%p129) target = $region20
        $region19: #{tpu_custom_call.1} parent=11 // pred_region
          _
        $region20: #{tpu_custom_call.1} parent=11 // pred_fallthru
          _
      $region12: #{tpu_custom_call.1} parent=5 // pred_fallthru
        _
      %p132 = scmp.lt.s32.totalorder %s17, 2
      // Predicated region
      $region21: #{tpu_custom_call.1} parent=5 // pred_check
        %p133 = pneg %p132
      $region22: #{tpu_custom_call.1} parent=5 // pred_check_branch
        %135 = sbr.rel (%p133) target = $region24
      $region23: #{tpu_custom_call.1} parent=5 // pred_region
        // Predicated region
        $region25: #{tpu_custom_call.1} parent=23 // pred_check
          %p136 = pneg %p37
        $region26: #{tpu_custom_call.1} parent=23 // pred_check_branch
          %138 = sbr.rel (%p136) target = $region28
        $region27: #{tpu_custom_call.1} parent=23 // pred_region
          %s139 = sand.u32 %s27, 1
          %s140 = scalar_lea.sflag [#allocation4], %s139
          %s141 = sand.u32 %s27, 1
          %s142 = smul.addr %s141, 2
          %s143 = scalar_lea.vmem [#allocation3], %s142
          %145 = vsyncadd %s140, 0
          %s146 = smul.addr %s17, 2
          %s147 = scalar_lea.hbm %s0, %s146
          %s149 = sshll.u32 %s147, 4
          %s150 = int_to_ptr.hbm [resolvable:$true] %s149
          %s151 = sshll.u32 %s143, 4
          %s152 = int_to_ptr.vmem [resolvable:$true] %s151
          %154 = dma.hbm_to_vmem [thread:$0]  %s150, 32, %s152, %s140
        $region28: #{tpu_custom_call.1} parent=23 // pred_fallthru
          _
      $region24: #{tpu_custom_call.1} parent=5 // pred_fallthru
        _
      %p155 = scmp.le.s32.totalorder 1, %s17
      %p156 = scmp.lt.s32.totalorder %s17, 3
      %p157 = pnand %p155, %p156
      %p158 = pneg %p157
      // Predicated region
      $region29: #{tpu_custom_call.1} parent=5 // pred_check
        _
      $region30: #{tpu_custom_call.1} parent=5 // pred_check_branch
        %160 = sbr.rel (%p157) target = $region32
      $region31: #{tpu_custom_call.1} parent=5 // pred_region
        %s161 = ssub.s32 %s17, 1
        %s162 = sand.u32 %s30, 1
        %s163 = scalar_lea.sflag [#allocation4], %s162
        %s164 = sand.u32 %s30, 1
        %s165 = smul.addr %s164, 2
        %s166 = scalar_lea.vmem [#allocation3], %s165
        // Predicated region
        $region33: #{tpu_custom_call.1} parent=31 // pred_check
          %p167 = pneg %p43
        $region34: #{tpu_custom_call.1} parent=31 // pred_check_branch
          %169 = sbr.rel (%p167) target = $region36
        $region35: #{tpu_custom_call.1} parent=31 // pred_region
          %171 = dma.done %s163, 32
        $region36: #{tpu_custom_call.1} parent=31 // pred_fallthru
          _
        %s172 = sand.u32 %s30, 1
        %s173 = scalar_lea.sflag [#allocation4], %s172
        %s174 = sand.u32 %s30, 1
        %s175 = smul.addr %s174, 2
        %s176 = scalar_lea.vmem [#allocation3], %s175
        %p177 = pneg %p43
        %p178 = pneg %p40
        %p179 = pneg %p64
        %p180 = pneg %p61
        %p181 = pneg %p85
        %p182 = pneg %p82
        %p183 = pneg %p111
        %p184 = pneg %p108
        %s185 = sand.u32 %s98, 1
        %s186 = scalar_lea.sflag [#allocation5], %s185
        %s187 = sand.u32 %s98, 1
        %s188 = scalar_lea.vmem [#allocation6], %s187
        %v189 = vld [vmem:[%s166] sm:$0x3]
        %v190 = vld [vmem:[#allocation2] sm:$0x1]
        %v191 = vld [vmem:[%s1] sm:$0x1]
        %193 = vset.pattern.permute.xlu0 0
        %194 = vperm.xlu0 %193, %v191
        %v195 = vpop.permute.xlu0 %194
        %v197 = vperm.slane %v195, 0
        %v198 = vmul.f32 %v197, %v189
        %200 = vset.pattern.permute.xlu0 0
        %201 = vperm.xlu0 %200, %v190
        %v202 = vpop.permute.xlu0 %201
        %v204 = vperm.slane %v202, 0
        %v205 = vadd.f32 %v204, %v198
        %206 = vset.pattern.permute.xlu0 1
        %207 = vperm.xlu0 %206, %v191
        %v208 = vpop.permute.xlu0 %207
        %v210 = vperm.slane %v208, 0
        %v211 = vmul.f32 %v210, %v189
        %v213 = vrot.slane %v211, 1
        %v215 = vadd.f32 %v205, %v213
        %216 = vst [vmem:[%s188] sm:$0x1] %v215
        %s217 = sand.u32 %s98, 1
        %s218 = scalar_lea.sflag [#allocation5], %s217
        %s219 = sand.u32 %s98, 1
        %s220 = scalar_lea.vmem [#allocation6], %s219
        // Predicated region
        $region37: #{tpu_custom_call.1} parent=31 // pred_check
          %p221 = pneg %p108
        $region38: #{tpu_custom_call.1} parent=31 // pred_check_branch
          %223 = sbr.rel (%p221) target = $region40
        $region39: #{tpu_custom_call.1} parent=31 // pred_region
          %225 = vsyncadd %s218, 0
          %s226 = scalar_lea.hbm %s3, %s22
          %s228 = sshll.u32 %s220, 4
          %s229 = int_to_ptr.vmem [resolvable:$true] %s228
          %s230 = sshll.u32 %s226, 4
          %s231 = int_to_ptr.hbm [resolvable:$true] %s230
          %233 = dma.vmem_to_hbm [thread:$0]  %s229, 16, %s231, %s218
        $region40: #{tpu_custom_call.1} parent=31 // pred_fallthru
          _
      $region32: #{tpu_custom_call.1} parent=5 // pred_fallthru
        _
      %p234 = scmp.le.s32.totalorder 2, %s17
      // Predicated region
      $region41: #{tpu_custom_call.1} parent=5 // pred_check
        %p235 = pneg %p234
      $region42: #{tpu_custom_call.1} parent=5 // pred_check_branch
        %237 = sbr.rel (%p235) target = $region44
      $region43: #{tpu_custom_call.1} parent=5 // pred_region
        %s238 = ssub.s32 %s17, 2
        // Predicated region
        $region45: #{tpu_custom_call.1} parent=43 // pred_check
          %p239 = pneg %p114
        $region46: #{tpu_custom_call.1} parent=43 // pred_check_branch
          %241 = sbr.rel (%p239) target = $region48
        $region47: #{tpu_custom_call.1} parent=43 // pred_region
          %s242 = sand.u32 %s99, 1
          %s243 = scalar_lea.sflag [#allocation5], %s242
          %s244 = sand.u32 %s99, 1
          %s245 = scalar_lea.vmem [#allocation6], %s244
          %247 = dma.done %s243, 16
        $region48: #{tpu_custom_call.1} parent=43 // pred_fallthru
          _
      $region44: #{tpu_custom_call.1} parent=5 // pred_fallthru
        _
    $region6: #{tpu_custom_call.1} parent=1 // loop_footer
      %s21 = sadd.s32 1, %s17
    $region7: #{tpu_custom_call.1} parent=1 // loop_footer_branch
      %16 = sbr.rel target = $region3
    $region8: #{tpu_custom_call.1} parent=1 // loop_exit
      _
    %248 = vsyncpa [#allocation4], 1
    %s249 = scalar_lea.sflag [#allocation4], 1
    %250 = vsyncpa %s249, 1
    %251 = vsyncpa [#allocation5], 1
    %s252 = scalar_lea.sflag [#allocation5], 1
    %253 = vsyncpa %s252, 1

</llo_original>
